<compile_context>
chip_gen: v6e
topology: v6e:2x2x1
jax: 0.10.0
libtpu: 0.0.40
codegen_flags: <defaults>
</compile_context>

<pallas_src>
import numpy as np
import jax
import jax.numpy as jnp
from jax.experimental import pallas as pl
from jax.experimental.pallas import tpu as pltpu

_MAX_INFLIGHT = 8  # max gather DMAs kept in flight simultaneously


def _make_select_kernel(c_out: int, num_sems: int):
    """Build the channel-gather kernel for a static number of output channels.

    The kernel never touches VMEM / vregs: each output channel c is produced
    by a single HBM->HBM strided DMA copying inputs[:, idx[c], :] (for every
    batch at once) into out[:, c, :], with up to `num_sems` copies in flight.
    """

    def kernel(idx_ref, x_hbm, o_hbm, sems):
        # c_out is tiny (channel reorder), so a static Python unroll is fine.
        copies = [None] * c_out
        for c in range(c_out):
            if c >= num_sems:
                # Free the semaphore we are about to reuse before re-arming it.
                copies[c - num_sems].wait()
            cp = pltpu.make_async_copy(
                x_hbm.at[:, pl.ds(idx_ref[c], 1), :],   # (N, 1, HW) source slab
                o_hbm.at[:, pl.ds(c, 1), :],            # (N, 1, HW) dest slab
                sems.at[c % num_sems],
            )
            cp.start()
            copies[c] = cp
        # Drain the remaining in-flight copies.
        for c in range(max(0, c_out - num_sems), c_out):
            copies[c].wait()

    return kernel


def channel_select(x: jax.Array, channels_indexes: jax.Array) -> jax.Array:
    """Equivalent of `inputs[:, channels_indexes, :, :]` for NCHW `x`."""
    N, C, H, W = x.shape
    C_out = int(channels_indexes.shape[0])
    HW = H * W
    itemsize = np.dtype(x.dtype).itemsize

    # Clamp indexes (PyTorch would raise; DMA bounds checks may not).
    idx = jnp.clip(channels_indexes.astype(jnp.int32), 0, C - 1)

    # Collapse (H, W) -> HW.  Free: NCHW channel planes are contiguous.
    x3 = x.reshape(N, C, HW)

    num_sems = max(1, min(C_out, _MAX_INFLIGHT))

    grid_spec = pltpu.PrefetchScalarGridSpec(
        num_scalar_prefetch=1,          # channel indexes land in SMEM
        grid=(1,),                      # single invocation; work is pure DMA
        in_specs=[pl.BlockSpec(memory_space=pl.ANY)],    # raw HBM input ref
        out_specs=pl.BlockSpec(memory_space=pl.ANY),     # raw HBM output ref
        scratch_shapes=[pltpu.SemaphoreType.DMA((num_sems,))],
    )

    out = pl.pallas_call(
        _make_select_kernel(C_out, num_sems),
        out_shape=jax.ShapeDtypeStruct((N, C_out, HW), x.dtype),
        grid_spec=grid_spec,
        compiler_params=pltpu.CompilerParams(
            dimension_semantics=("arbitrary",),
        ),
        cost_estimate=pl.CostEstimate(
            flops=0,
            transcendentals=0,
            bytes_accessed=2 * N * C_out * HW * itemsize,
        ),
    )(idx, x3)

    return out.reshape(N, C_out, H, W)


if __name__ == "__main__":
    # Deterministic setup: BGR->RGB style channel reorder + one repeat.
    channels = np.array([2, 1, 0, 1], dtype=np.int64)  # buffer from __init__
    channels_jax = jnp.asarray(channels, dtype=jnp.int32)

    key = jax.random.PRNGKey(0)
    x = jax.random.normal(key, (2, 4, 16, 16), dtype=jnp.float32)

    out = channel_select(x, channels_jax)
    out = jax.block_until_ready(out)

    # Reference check against plain JAX indexing (same semantics as torch).
    ref = x[:, channels, :, :]
    np.testing.assert_allclose(np.asarray(out), np.asarray(ref), rtol=0, atol=0)

    print("KERNEL_OK")
</pallas_src>

<mosaic_0001>
module attributes {stable_mosaic.version = 11 : i64} {
  func.func @kernel(%arg0: i32, %arg1: memref<4xi32, #tpu.memory_space<smem>>, %arg2: memref<2x4x256xf32, #tpu.memory_space<any>>, %arg3: memref<2x4x256xf32, #tpu.memory_space<any>>, %arg4: memref<4x!tpu.dma_semaphore, #tpu.memory_space<semaphore_mem>>) attributes {dimension_semantics = [#tpu.dimension_semantics<arbitrary>], iteration_bounds = array<i64: 1>, scalar_prefetch = 1 : i64, scratch_operands = 1 : i64, tpu.core_type = #tpu.core_type<tc>, window_params = [{}, {}]} {
    %c0 = arith.constant 0 : index
    %0 = memref.load %arg1[%c0] : memref<4xi32, #tpu.memory_space<smem>>
    %c0_i32 = arith.constant 0 : i32
    %c0_i32_0 = arith.constant 0 : i32
    %c0_i32_1 = arith.constant 0 : i32
    %1 = tpu.memref_slice %arg2[%c0_i32_0, %0, %c0_i32_1] : memref<2x4x256xf32, #tpu.memory_space<any>> -> memref<2x1x256xf32, #tpu.memory_space<any>>
    %c0_i32_2 = arith.constant 0 : i32
    %c0_i32_3 = arith.constant 0 : i32
    %c0_i32_4 = arith.constant 0 : i32
    %2 = tpu.memref_slice %arg3[%c0_i32_2, %c0_i32_3, %c0_i32_4] : memref<2x4x256xf32, #tpu.memory_space<any>> -> memref<2x1x256xf32, #tpu.memory_space<any>>
    %3 = tpu.memref_slice %arg4[%c0_i32] : memref<4x!tpu.dma_semaphore, #tpu.memory_space<semaphore_mem>> -> memref<1x!tpu.dma_semaphore, #tpu.memory_space<semaphore_mem>>
    %4 = tpu.memref_squeeze %3 : memref<1x!tpu.dma_semaphore, #tpu.memory_space<semaphore_mem>> -> memref<!tpu.dma_semaphore, #tpu.memory_space<semaphore_mem>>
    tpu.enqueue_dma source(%1 : memref<2x1x256xf32, #tpu.memory_space<any>>) target(%2 : memref<2x1x256xf32, #tpu.memory_space<any>>) target_semaphore(%4 : memref<!tpu.dma_semaphore, #tpu.memory_space<semaphore_mem>>)
    %c1 = arith.constant 1 : index
    %5 = memref.load %arg1[%c1] : memref<4xi32, #tpu.memory_space<smem>>
    %c1_i32 = arith.constant 1 : i32
    %c0_i32_5 = arith.constant 0 : i32
    %c0_i32_6 = arith.constant 0 : i32
    %6 = tpu.memref_slice %arg2[%c0_i32_5, %5, %c0_i32_6] : memref<2x4x256xf32, #tpu.memory_space<any>> -> memref<2x1x256xf32, #tpu.memory_space<any>>
    %c0_i32_7 = arith.constant 0 : i32
    %c1_i32_8 = arith.constant 1 : i32
    %c0_i32_9 = arith.constant 0 : i32
    %7 = tpu.memref_slice %arg3[%c0_i32_7, %c1_i32_8, %c0_i32_9] : memref<2x4x256xf32, #tpu.memory_space<any>> -> memref<2x1x256xf32, #tpu.memory_space<any>>
    %8 = tpu.memref_slice %arg4[%c1_i32] : memref<4x!tpu.dma_semaphore, #tpu.memory_space<semaphore_mem>> -> memref<1x!tpu.dma_semaphore, #tpu.memory_space<semaphore_mem>>
    %9 = tpu.memref_squeeze %8 : memref<1x!tpu.dma_semaphore, #tpu.memory_space<semaphore_mem>> -> memref<!tpu.dma_semaphore, #tpu.memory_space<semaphore_mem>>
    tpu.enqueue_dma source(%6 : memref<2x1x256xf32, #tpu.memory_space<any>>) target(%7 : memref<2x1x256xf32, #tpu.memory_space<any>>) target_semaphore(%9 : memref<!tpu.dma_semaphore, #tpu.memory_space<semaphore_mem>>)
    %c2 = arith.constant 2 : index
    %10 = memref.load %arg1[%c2] : memref<4xi32, #tpu.memory_space<smem>>
    %c2_i32 = arith.constant 2 : i32
    %c0_i32_10 = arith.constant 0 : i32
    %c0_i32_11 = arith.constant 0 : i32
    %11 = tpu.memref_slice %arg2[%c0_i32_10, %10, %c0_i32_11] : memref<2x4x256xf32, #tpu.memory_space<any>> -> memref<2x1x256xf32, #tpu.memory_space<any>>
    %c0_i32_12 = arith.constant 0 : i32
    %c2_i32_13 = arith.constant 2 : i32
    %c0_i32_14 = arith.constant 0 : i32
    %12 = tpu.memref_slice %arg3[%c0_i32_12, %c2_i32_13, %c0_i32_14] : memref<2x4x256xf32, #tpu.memory_space<any>> -> memref<2x1x256xf32, #tpu.memory_space<any>>
    %13 = tpu.memref_slice %arg4[%c2_i32] : memref<4x!tpu.dma_semaphore, #tpu.memory_space<semaphore_mem>> -> memref<1x!tpu.dma_semaphore, #tpu.memory_space<semaphore_mem>>
    %14 = tpu.memref_squeeze %13 : memref<1x!tpu.dma_semaphore, #tpu.memory_space<semaphore_mem>> -> memref<!tpu.dma_semaphore, #tpu.memory_space<semaphore_mem>>
    tpu.enqueue_dma source(%11 : memref<2x1x256xf32, #tpu.memory_space<any>>) target(%12 : memref<2x1x256xf32, #tpu.memory_space<any>>) target_semaphore(%14 : memref<!tpu.dma_semaphore, #tpu.memory_space<semaphore_mem>>)
    %c3 = arith.constant 3 : index
    %15 = memref.load %arg1[%c3] : memref<4xi32, #tpu.memory_space<smem>>
    %c3_i32 = arith.constant 3 : i32
    %c0_i32_15 = arith.constant 0 : i32
    %c0_i32_16 = arith.constant 0 : i32
    %16 = tpu.memref_slice %arg2[%c0_i32_15, %15, %c0_i32_16] : memref<2x4x256xf32, #tpu.memory_space<any>> -> memref<2x1x256xf32, #tpu.memory_space<any>>
    %c0_i32_17 = arith.constant 0 : i32
    %c3_i32_18 = arith.constant 3 : i32
    %c0_i32_19 = arith.constant 0 : i32
    %17 = tpu.memref_slice %arg3[%c0_i32_17, %c3_i32_18, %c0_i32_19] : memref<2x4x256xf32, #tpu.memory_space<any>> -> memref<2x1x256xf32, #tpu.memory_space<any>>
    %18 = tpu.memref_slice %arg4[%c3_i32] : memref<4x!tpu.dma_semaphore, #tpu.memory_space<semaphore_mem>> -> memref<1x!tpu.dma_semaphore, #tpu.memory_space<semaphore_mem>>
    %19 = tpu.memref_squeeze %18 : memref<1x!tpu.dma_semaphore, #tpu.memory_space<semaphore_mem>> -> memref<!tpu.dma_semaphore, #tpu.memory_space<semaphore_mem>>
    tpu.enqueue_dma source(%16 : memref<2x1x256xf32, #tpu.memory_space<any>>) target(%17 : memref<2x1x256xf32, #tpu.memory_space<any>>) target_semaphore(%19 : memref<!tpu.dma_semaphore, #tpu.memory_space<semaphore_mem>>)
    %c0_i32_20 = arith.constant 0 : i32
    %c0_i32_21 = arith.constant 0 : i32
    %c0_i32_22 = arith.constant 0 : i32
    %20 = tpu.memref_slice %arg2[%c0_i32_21, %0, %c0_i32_22] : memref<2x4x256xf32, #tpu.memory_space<any>> -> memref<2x1x256xf32, #tpu.memory_space<any>>
    %c0_i32_23 = arith.constant 0 : i32
    %c0_i32_24 = arith.constant 0 : i32
    %c0_i32_25 = arith.constant 0 : i32
    %21 = tpu.memref_slice %arg3[%c0_i32_23, %c0_i32_24, %c0_i32_25] : memref<2x4x256xf32, #tpu.memory_space<any>> -> memref<2x1x256xf32, #tpu.memory_space<any>>
    %22 = tpu.memref_slice %arg4[%c0_i32_20] : memref<4x!tpu.dma_semaphore, #tpu.memory_space<semaphore_mem>> -> memref<1x!tpu.dma_semaphore, #tpu.memory_space<semaphore_mem>>
    %23 = tpu.memref_squeeze %22 : memref<1x!tpu.dma_semaphore, #tpu.memory_space<semaphore_mem>> -> memref<!tpu.dma_semaphore, #tpu.memory_space<semaphore_mem>>
    tpu.wait_dma2 semaphore(%23 : memref<!tpu.dma_semaphore, #tpu.memory_space<semaphore_mem>>) src(%20 : memref<2x1x256xf32, #tpu.memory_space<any>>) dst(%21 : memref<2x1x256xf32, #tpu.memory_space<any>>)
    %c1_i32_26 = arith.constant 1 : i32
    %c0_i32_27 = arith.constant 0 : i32
    %c0_i32_28 = arith.constant 0 : i32
    %24 = tpu.memref_slice %arg2[%c0_i32_27, %5, %c0_i32_28] : memref<2x4x256xf32, #tpu.memory_space<any>> -> memref<2x1x256xf32, #tpu.memory_space<any>>
    %c0_i32_29 = arith.constant 0 : i32
    %c1_i32_30 = arith.constant 1 : i32
    %c0_i32_31 = arith.constant 0 : i32
    %25 = tpu.memref_slice %arg3[%c0_i32_29, %c1_i32_30, %c0_i32_31] : memref<2x4x256xf32, #tpu.memory_space<any>> -> memref<2x1x256xf32, #tpu.memory_space<any>>
    %26 = tpu.memref_slice %arg4[%c1_i32_26] : memref<4x!tpu.dma_semaphore, #tpu.memory_space<semaphore_mem>> -> memref<1x!tpu.dma_semaphore, #tpu.memory_space<semaphore_mem>>
    %27 = tpu.memref_squeeze %26 : memref<1x!tpu.dma_semaphore, #tpu.memory_space<semaphore_mem>> -> memref<!tpu.dma_semaphore, #tpu.memory_space<semaphore_mem>>
    tpu.wait_dma2 semaphore(%27 : memref<!tpu.dma_semaphore, #tpu.memory_space<semaphore_mem>>) src(%24 : memref<2x1x256xf32, #tpu.memory_space<any>>) dst(%25 : memref<2x1x256xf32, #tpu.memory_space<any>>)
    %c2_i32_32 = arith.constant 2 : i32
    %c0_i32_33 = arith.constant 0 : i32
    %c0_i32_34 = arith.constant 0 : i32
    %28 = tpu.memref_slice %arg2[%c0_i32_33, %10, %c0_i32_34] : memref<2x4x256xf32, #tpu.memory_space<any>> -> memref<2x1x256xf32, #tpu.memory_space<any>>
    %c0_i32_35 = arith.constant 0 : i32
    %c2_i32_36 = arith.constant 2 : i32
    %c0_i32_37 = arith.constant 0 : i32
    %29 = tpu.memref_slice %arg3[%c0_i32_35, %c2_i32_36, %c0_i32_37] : memref<2x4x256xf32, #tpu.memory_space<any>> -> memref<2x1x256xf32, #tpu.memory_space<any>>
    %30 = tpu.memref_slice %arg4[%c2_i32_32] : memref<4x!tpu.dma_semaphore, #tpu.memory_space<semaphore_mem>> -> memref<1x!tpu.dma_semaphore, #tpu.memory_space<semaphore_mem>>
    %31 = tpu.memref_squeeze %30 : memref<1x!tpu.dma_semaphore, #tpu.memory_space<semaphore_mem>> -> memref<!tpu.dma_semaphore, #tpu.memory_space<semaphore_mem>>
    tpu.wait_dma2 semaphore(%31 : memref<!tpu.dma_semaphore, #tpu.memory_space<semaphore_mem>>) src(%28 : memref<2x1x256xf32, #tpu.memory_space<any>>) dst(%29 : memref<2x1x256xf32, #tpu.memory_space<any>>)
    %c3_i32_38 = arith.constant 3 : i32
    %c0_i32_39 = arith.constant 0 : i32
    %c0_i32_40 = arith.constant 0 : i32
    %32 = tpu.memref_slice %arg2[%c0_i32_39, %15, %c0_i32_40] : memref<2x4x256xf32, #tpu.memory_space<any>> -> memref<2x1x256xf32, #tpu.memory_space<any>>
    %c0_i32_41 = arith.constant 0 : i32
    %c3_i32_42 = arith.constant 3 : i32
    %c0_i32_43 = arith.constant 0 : i32
    %33 = tpu.memref_slice %arg3[%c0_i32_41, %c3_i32_42, %c0_i32_43] : memref<2x4x256xf32, #tpu.memory_space<any>> -> memref<2x1x256xf32, #tpu.memory_space<any>>
    %34 = tpu.memref_slice %arg4[%c3_i32_38] : memref<4x!tpu.dma_semaphore, #tpu.memory_space<semaphore_mem>> -> memref<1x!tpu.dma_semaphore, #tpu.memory_space<semaphore_mem>>
    %35 = tpu.memref_squeeze %34 : memref<1x!tpu.dma_semaphore, #tpu.memory_space<semaphore_mem>> -> memref<!tpu.dma_semaphore, #tpu.memory_space<semaphore_mem>>
    tpu.wait_dma2 semaphore(%35 : memref<!tpu.dma_semaphore, #tpu.memory_space<semaphore_mem>>) src(%32 : memref<2x1x256xf32, #tpu.memory_space<any>>) dst(%33 : memref<2x1x256xf32, #tpu.memory_space<any>>)
    return
  }
}

</mosaic_0001>

<llo_original>
// kernel: tpu_custom_call.1
$region0: #{tpu_custom_call.1}
  #allocation0 [shape = 'u32[]', space=smem, size = 0x4, offset = 0x4, fixed_abs, tag = 'smem constant byte address 0x4 - core index']
  #allocation1 [shape = 'u32[144,128]{1,0:T(1,128)}', space=vmem, size = 0x12000, scoped, tag = 'internal scratch']
  #allocation2 [shape = 's32[4]{0}', space=sflag, size = 0x10, scoped, tag = 'scratch operand']
  #allocation3 [shape = 's32[1]{0}', space=sflag, size = 0x4, scoped, tag = 'scoped memory for tpu_custom_call.1']
  #allocation4 [shape = 'u8[512]{0}', space=smem, size = 0x200, scoped, tag = 'prefetched SMEM operand 0']
  #allocation5 [shape = 's32[]', space=sflag, size = 0x4, offset = 0, fixed_abs, tag = 'sflag constant byte address 0x0 - dummy sync flag']
  #allocation7 [shape = 's32[]', space=sflag, size = 0x4, offset = 0, fixed_abs, tag = 'sflag constant byte address 0x0 - dummy sync flag']
  #allocation9 [shape = 's32[]', space=sflag, size = 0x4, offset = 0, fixed_abs, tag = 'sflag constant byte address 0x0 - dummy sync flag']
  #allocation11 [shape = 's32[]', space=sflag, size = 0x4, offset = 0, fixed_abs, tag = 'sflag constant byte address 0x0 - dummy sync flag']
  %s0 = inlined_call_operand.hbm [shape: s32[4], index: 0, kind: input, shape index: {}]
  %s1 = inlined_call_operand.hbm [shape: f32[2,4,256], index: 1, kind: input, shape index: {}]
  %s2 = inlined_call_operand.hbm [shape: f32[2,4,256], index: 2, kind: output, shape index: {}]
  %s3 = sld [smem:[#allocation0]]
  $region2: #{tpu_custom_call.1} parent=0
    _
  %s5 = ssub.s32 1, %s3
  %s6 = scalar_select 0, %s5, %s3
  %8 = dma.hbm_to_smem %s0, 16, [#allocation4], [#allocation3]
  %9 = dma.done [#allocation3], 16
  %10 = sfence
  $region1: #{tpu_custom_call.1} parent=0
    #allocation6 [shape = 'u32[3]{0}', space=smem, size = 0xc, scoped, tag = 'DMA stride descriptor']
    #allocation8 [shape = 'u32[3]{0}', space=smem, size = 0xc, scoped, tag = 'DMA stride descriptor']
    #allocation10 [shape = 'u32[3]{0}', space=smem, size = 0xc, scoped, tag = 'DMA stride descriptor']
    #allocation12 [shape = 'u32[3]{0}', space=smem, size = 0xc, scoped, tag = 'DMA stride descriptor']
    %s11 = sld [smem:[#allocation4]]
    %s12 = sshrl.u32 %s11, 2
    %s13 = sand.u32 %s11, 3
    %s14 = smul.u32 %s12, 8
    %s15 = sadd.s32 %s13, %s14
    %s16 = smul.addr %s15, 16
    %s17 = scalar_lea.hbm %s1, %s16
    %s19 = sshll.u32 1, 14
    %s20 = sxor.u32 4294967295, %s19
    %24 = sst [smem:[#allocation6]] 64
    %s25 = scalar_lea.smem [#allocation6], 1
    %26 = sst [smem:[%s25]] 64
    %s27 = scalar_lea.smem [#allocation6], 2
    %28 = sst [smem:[%s27]] 1
    %30 = dma.general %s17, 64, %s2, [#allocation2], 131072, [#allocation6], 0, 0
    %s31 = sld [smem:[#allocation4 + $0x1]]
    %s32 = sshrl.u32 %s31, 2
    %s33 = sand.u32 %s31, 3
    %s34 = smul.u32 %s32, 8
    %s35 = sadd.s32 %s33, %s34
    %s36 = smul.addr %s35, 16
    %s37 = scalar_lea.hbm %s1, %s36
    %s38 = scalar_lea.hbm %s2, 16
    %s39 = scalar_lea.sflag [#allocation2], 1
    %s41 = sshll.u32 1, 14
    %s42 = sxor.u32 4294967295, %s41
    %46 = sst [smem:[#allocation8]] 64
    %s47 = scalar_lea.smem [#allocation8], 1
    %48 = sst [smem:[%s47]] 64
    %s49 = scalar_lea.smem [#allocation8], 2
    %50 = sst [smem:[%s49]] 1
    %52 = dma.general %s37, 64, %s38, %s39, 131072, [#allocation8], 0, 0
    %s53 = sld [smem:[#allocation4 + $0x2]]
    %s54 = sshrl.u32 %s53, 2
    %s55 = sand.u32 %s53, 3
    %s56 = smul.u32 %s54, 8
    %s57 = sadd.s32 %s55, %s56
    %s58 = smul.addr %s57, 16
    %s59 = scalar_lea.hbm %s1, %s58
    %s60 = scalar_lea.hbm %s2, 32
    %s61 = scalar_lea.sflag [#allocation2], 2
    %s63 = sshll.u32 1, 14
    %s64 = sxor.u32 4294967295, %s63
    %68 = sst [smem:[#allocation10]] 64
    %s69 = scalar_lea.smem [#allocation10], 1
    %70 = sst [smem:[%s69]] 64
    %s71 = scalar_lea.smem [#allocation10], 2
    %72 = sst [smem:[%s71]] 1
    %74 = dma.general %s59, 64, %s60, %s61, 131072, [#allocation10], 0, 0
    %s75 = sld [smem:[#allocation4 + $0x3]]
    %s76 = sshrl.u32 %s75, 2
    %s77 = sand.u32 %s75, 3
    %s78 = smul.u32 %s76, 8
    %s79 = sadd.s32 %s77, %s78
    %s80 = smul.addr %s79, 16
    %s81 = scalar_lea.hbm %s1, %s80
    %s82 = scalar_lea.hbm %s2, 48
    %s83 = scalar_lea.sflag [#allocation2], 3
    %s85 = sshll.u32 1, 14
    %s86 = sxor.u32 4294967295, %s85
    %90 = sst [smem:[#allocation12]] 64
    %s91 = scalar_lea.smem [#allocation12], 1
    %92 = sst [smem:[%s91]] 64
    %s93 = scalar_lea.smem [#allocation12], 2
    %94 = sst [smem:[%s93]] 1
    %96 = dma.general %s81, 64, %s82, %s83, 131072, [#allocation12], 0, 0
    %s97 = smul.u32 2, 1
    %s98 = smul.u32 %s97, 2
    %s99 = sshll.u32 %s98, 4
    %100 = dma.done [#allocation2], %s99
    %s101 = sshll.u32 %s98, 4
    %102 = dma.done %s39, %s101
    %s103 = sshll.u32 %s98, 4
    %104 = dma.done %s61, %s103
    %s105 = sshll.u32 %s98, 4
    %106 = dma.done %s83, %s105
  %107 = vsyncmov [#allocation2]
  %s108 = vpop.sfrf %107
  %p109 = scmp.eq.s32.totalorder %s108, 0
  %p110 = pneg %p109
  %112 = shalt.err (%p110)
  %s113 = scalar_lea.sflag [#allocation2], 1
  %114 = vsyncmov %s113
  %s115 = vpop.sfrf %114
  %p116 = scmp.eq.s32.totalorder %s115, 0
  %p117 = pneg %p116
  %119 = shalt.err (%p117)
  %s120 = scalar_lea.sflag [#allocation2], 2
  %121 = vsyncmov %s120
  %s122 = vpop.sfrf %121
  %p123 = scmp.eq.s32.totalorder %s122, 0
  %p124 = pneg %p123
  %126 = shalt.err (%p124)
  %s127 = scalar_lea.sflag [#allocation2], 3
  %128 = vsyncmov %s127
  %s129 = vpop.sfrf %128
  %p130 = scmp.eq.s32.totalorder %s129, 0
  %p131 = pneg %p130
  %133 = shalt.err (%p131)

</llo_original>
